<compile_context>
chip_gen: v6e
topology: v6e:2x2x1
jax: 0.10.0
libtpu: 0.0.40
codegen_flags: <defaults>
</compile_context>

<pallas_src>
import functools

import jax
import jax.numpy as jnp
from jax.experimental import pallas as pl
from jax.experimental.pallas import tpu as pltpu

LANE = 128


def _round_up(x, m):
    return ((x + m - 1) // m) * m


def _vmem_limit_bytes():
    # Generation-aware scoped-VMEM budget: ~96 MiB on v5e/v6e (128 MiB physical),
    # ~48 MiB on v7x (64 MiB physical).
    cap = 128 * 1024 * 1024
    try:
        cap = int(getattr(pltpu.get_tpu_info(), "vmem_capacity_bytes", cap))
    except Exception:
        pass
    return int(min(cap * 3 // 4, 100 * 1024 * 1024))


# ---------------------------------------------------------------------------
# Kernel 1: item-side GCN output, tiled over item rows.
#   outputs: h_i      = d_i * item_feats            (I, H)  in compute_dtype
#            gcn_i^T  = (support_i @ Wg^T + bg)^T   (H, I)  in compute_dtype
# ---------------------------------------------------------------------------
def _item_side_kernel(r_cols_ref,    # (U_pad, TI)    R column tile, compute_dtype
                      scaled_u_ref,  # (U_pad, H_pad) d_u * user_emb, compute_dtype
                      ifeat_ref,     # (TI, F_pad)    raw item features, compute_dtype
                      d_i_ref,       # (TI, 1)        f32
                      wft_t_ref,     # (F_pad, H_pad) feature_transform W^T, compute_dtype
                      bft_ref,       # (1, H_pad)     f32
                      wg_t_ref,      # (H_pad, H_pad) gcn linear W^T, compute_dtype
                      bg_ref,        # (1, H_pad)     f32
                      h_i_ref,       # out (TI, H_pad)  compute_dtype
                      gcn_i_t_ref,   # out (H_pad, TI)  compute_dtype
                      *, compute_dtype):
    f32 = jnp.float32
    d_i = d_i_ref[...]                                            # (TI, 1) f32

    # item_features = Linear(item_feature_matrix)  (f32 accumulation)
    item_feats = jnp.dot(ifeat_ref[...], wft_t_ref[...],
                         preferred_element_type=f32) + bft_ref[...]   # (TI, H)

    h_i = d_i * item_feats                                        # f32 (TI, H)

    # R^T @ scaled_u for this item tile -- transposed-LHS contraction,
    # no materialized R^T anywhere.
    rtsu = jax.lax.dot_general(
        r_cols_ref[...], scaled_u_ref[...],
        dimension_numbers=(((0,), (0,)), ((), ())),
        preferred_element_type=f32)                               # (TI, H)

    support_i = d_i * (rtsu + h_i)                                # f32

    gcn_i = jnp.dot(support_i.astype(compute_dtype), wg_t_ref[...],
                    preferred_element_type=f32) + bg_ref[...]     # f32 (TI, H)

    h_i_ref[...] = h_i.astype(h_i_ref.dtype)
    # Transpose once here (amortized over the whole call) so kernel 2's score
    # matmul is a plain lane-contraction with no per-step relayout.
    gcn_i_t_ref[...] = gcn_i.T.astype(gcn_i_t_ref.dtype)


# ---------------------------------------------------------------------------
# Kernel 2: user-side GCN output + final user @ item^T scores, tiled over users.
# ---------------------------------------------------------------------------
def _user_side_kernel(r_ref,         # (TU, I_pad)    user tile of R, compute_dtype
                      scaled_u_ref,  # (TU, H_pad)    d_u * user_emb tile, f32
                      d_u_ref,       # (TU, 1)        f32
                      h_i_ref,       # (I_pad, H_pad) d_i * item_feats, compute_dtype
                      gcn_i_t_ref,   # (H_pad, I_pad) item gcn output, transposed, compute_dtype
                      wg_t_ref,      # (H_pad, H_pad) compute_dtype
                      bg_ref,        # (1, H_pad)     f32
                      out_ref,       # (TU, I_pad)    f32 score tile
                      *, compute_dtype):
    f32 = jnp.float32

    # R @ (d_i * item_feats): dominant (HBM-bound) matmul of the hot loop.
    rh = jnp.dot(r_ref[...], h_i_ref[...], preferred_element_type=f32)   # (TU, H)

    support_u = d_u_ref[...] * (rh + scaled_u_ref[...])                  # f32

    gcn_u = jnp.dot(support_u.astype(compute_dtype), wg_t_ref[...],
                    preferred_element_type=f32) + bg_ref[...]            # (TU, H)

    # scores = gcn_u @ gcn_i^T ; gcn_i arrives pre-transposed -> plain jnp.dot.
    out_ref[...] = jnp.dot(gcn_u.astype(compute_dtype), gcn_i_t_ref[...],
                           preferred_element_type=f32)


# ---------------------------------------------------------------------------
# Wrapper: padding / layout plumbing + pallas_call plumbing.
# ---------------------------------------------------------------------------
def gcn_recommender_forward(user_item_matrix, item_feature_matrix, params,
                            *, compute_dtype=jnp.float32):
    f32 = jnp.float32
    U, I = user_item_matrix.shape
    F = item_feature_matrix.shape[1]
    H = params["user_embedding"].shape[1]

    # Tile sizes (lane-dense, MXU-friendly).  tile_u multiple of 16 so bf16
    # sublane packing stays legal; 256 fills the 256-wide MXU on v6e/v7x.
    tile_u = 256 if U >= 256 else _round_up(U, 16)
    U_pad = _round_up(U, tile_u)
    I_pad0 = _round_up(I, LANE)
    tile_i = 512 if I_pad0 >= 512 else I_pad0
    I_pad = _round_up(I_pad0, tile_i)
    H_pad = _round_up(H, LANE)
    F_pad = _round_up(F, LANE)

    vmem_limit = _vmem_limit_bytes()

    # --- wrapper-side prep (f32 degrees; compute_dtype matmul operands) -----
    r_f32 = jnp.zeros((U_pad, I_pad), f32).at[:U, :I].set(user_item_matrix.astype(f32))
    d_u = jax.lax.rsqrt(jnp.sum(r_f32, axis=1, keepdims=True) + 1.0)       # (U_pad, 1)
    d_i = jax.lax.rsqrt(jnp.sum(r_f32, axis=0, keepdims=True).T + 1.0)     # (I_pad, 1)

    uemb = jnp.zeros((U_pad, H_pad), f32).at[:U, :H].set(
        params["user_embedding"].astype(f32))
    scaled_u = d_u * uemb                          # f32, used additively in kernel 2
    scaled_u_c = scaled_u.astype(compute_dtype)    # matmul operand for kernel 1

    r = r_f32.astype(compute_dtype)                # binary values exact in bf16
    ifeat = jnp.zeros((I_pad, F_pad), f32).at[:I, :F].set(
        item_feature_matrix.astype(f32)).astype(compute_dtype)
    wft_t_c = jnp.zeros((F_pad, H_pad), f32).at[:F, :H].set(
        params["feature_transform_w"].T).astype(compute_dtype)
    bft = jnp.zeros((1, H_pad), f32).at[0, :H].set(params["feature_transform_b"])
    wg_t_c = jnp.zeros((H_pad, H_pad), f32).at[:H, :H].set(
        params["gcn_linear_w"].T).astype(compute_dtype)
    bg = jnp.zeros((1, H_pad), f32).at[0, :H].set(params["gcn_linear_b"])

    # --- kernel 1: item side, tiled over item rows --------------------------
    h_i, gcn_i_t = pl.pallas_call(
        functools.partial(_item_side_kernel, compute_dtype=compute_dtype),
        out_shape=(jax.ShapeDtypeStruct((I_pad, H_pad), compute_dtype),
                   jax.ShapeDtypeStruct((H_pad, I_pad), compute_dtype)),
        grid=(I_pad // tile_i,),
        in_specs=[
            pl.BlockSpec((U_pad, tile_i), lambda i: (0, i)),   # R column tile
            pl.BlockSpec((U_pad, H_pad), lambda i: (0, 0)),    # d_u * user_emb
            pl.BlockSpec((tile_i, F_pad), lambda i: (i, 0)),   # item features tile
            pl.BlockSpec((tile_i, 1), lambda i: (i, 0)),       # d_i tile
            pl.BlockSpec((F_pad, H_pad), lambda i: (0, 0)),    # Wft^T
            pl.BlockSpec((1, H_pad), lambda i: (0, 0)),        # bft
            pl.BlockSpec((H_pad, H_pad), lambda i: (0, 0)),    # Wg^T
            pl.BlockSpec((1, H_pad), lambda i: (0, 0)),        # bg
        ],
        out_specs=(pl.BlockSpec((tile_i, H_pad), lambda i: (i, 0)),
                   pl.BlockSpec((H_pad, tile_i), lambda i: (0, i))),
        compiler_params=pltpu.CompilerParams(
            dimension_semantics=("parallel",),
            vmem_limit_bytes=vmem_limit),
    )(r, scaled_u_c, ifeat, d_i, wft_t_c, bft, wg_t_c, bg)

    # --- kernel 2: user side + scores, tiled over user rows -----------------
    # TODO(synk): for very large item catalogs on v7x, single-buffer the
    # grid-invariant h_i / gcn_i_t / Wg^T blocks (pl.Buffered(1)) or add a
    # second grid axis over score columns to bound resident VMEM.
    out_padded = pl.pallas_call(
        functools.partial(_user_side_kernel, compute_dtype=compute_dtype),
        out_shape=jax.ShapeDtypeStruct((U_pad, I_pad), f32),
        grid=(U_pad // tile_u,),
        in_specs=[
            pl.BlockSpec((tile_u, I_pad), lambda i: (i, 0)),   # R tile
            pl.BlockSpec((tile_u, H_pad), lambda i: (i, 0)),   # d_u * user_emb tile
            pl.BlockSpec((tile_u, 1), lambda i: (i, 0)),       # d_u tile
            pl.BlockSpec((I_pad, H_pad), lambda i: (0, 0)),    # h_i (full, invariant)
            pl.BlockSpec((H_pad, I_pad), lambda i: (0, 0)),    # gcn_i^T (full, invariant)
            pl.BlockSpec((H_pad, H_pad), lambda i: (0, 0)),    # Wg^T
            pl.BlockSpec((1, H_pad), lambda i: (0, 0)),        # bg
        ],
        out_specs=pl.BlockSpec((tile_u, I_pad), lambda i: (i, 0)),
        compiler_params=pltpu.CompilerParams(
            dimension_semantics=("parallel",),
            vmem_limit_bytes=vmem_limit),
    )(r, scaled_u, d_u, h_i, gcn_i_t, wg_t_c, bg)

    return out_padded[:U, :I]


# ---------------------------------------------------------------------------
# Pure-JAX reference mirroring the PyTorch forward exactly.
# ---------------------------------------------------------------------------
def gcn_recommender_reference(user_item_matrix, item_feature_matrix, params):
    num_users, num_items = user_item_matrix.shape
    adj_top = jnp.concatenate(
        [jnp.zeros((num_users, num_users), jnp.float32), user_item_matrix], axis=1)
    adj_bottom = jnp.concatenate(
        [user_item_matrix.T, jnp.zeros((num_items, num_items), jnp.float32)], axis=1)
    adj = jnp.concatenate([adj_top, adj_bottom], axis=0)

    a_hat = adj + jnp.eye(adj.shape[0], dtype=jnp.float32)
    row_sum = jnp.maximum(a_hat.sum(axis=1), 1e-8)
    d_inv_sqrt = row_sum ** -0.5
    adj_norm = jnp.diag(d_inv_sqrt) @ a_hat @ jnp.diag(d_inv_sqrt)

    item_feats = (item_feature_matrix @ params["feature_transform_w"].T
                  + params["feature_transform_b"])
    node_feats = jnp.concatenate([params["user_embedding"], item_feats], axis=0)
    support = adj_norm @ node_feats
    gcn_out = support @ params["gcn_linear_w"].T + params["gcn_linear_b"]
    user_out = gcn_out[:num_users]
    item_out = gcn_out[num_users:]
    return user_out @ item_out.T


def init_params(key, num_users, num_items, item_features_dim, hidden_dim):
    ks = jax.random.split(key, 6)
    # nn.Embedding -> N(0, 1); nn.Linear -> U(-1/sqrt(fan_in), 1/sqrt(fan_in))
    lim_ft = 1.0 / (item_features_dim ** 0.5)
    lim_g = 1.0 / (hidden_dim ** 0.5)
    return {
        "user_embedding": jax.random.normal(ks[0], (num_users, hidden_dim), jnp.float32),
        # item_embedding exists in the module but is unused by forward().
        "item_embedding": jax.random.normal(ks[1], (num_items, hidden_dim), jnp.float32),
        "feature_transform_w": jax.random.uniform(
            ks[2], (hidden_dim, item_features_dim), jnp.float32, -lim_ft, lim_ft),
        "feature_transform_b": jax.random.uniform(
            ks[3], (hidden_dim,), jnp.float32, -lim_ft, lim_ft),
        "gcn_linear_w": jax.random.uniform(
            ks[4], (hidden_dim, hidden_dim), jnp.float32, -lim_g, lim_g),
        "gcn_linear_b": jax.random.uniform(
            ks[5], (hidden_dim,), jnp.float32, -lim_g, lim_g),
    }


if __name__ == "__main__":
    num_users = 8
    num_items = 16
    item_features_dim = 24
    hidden_dim = 32

    key = jax.random.PRNGKey(0)
    k_params, k_ui, k_feat = jax.random.split(key, 3)

    params = init_params(k_params, num_users, num_items, item_features_dim, hidden_dim)

    # Binary interaction matrix and dense item features.
    user_item_matrix = (
        jax.random.uniform(k_ui, (num_users, num_items)) > 0.7
    ).astype(jnp.float32)
    item_feature_matrix = jax.random.normal(
        k_feat, (num_items, item_features_dim), jnp.float32)

    ref = gcn_recommender_reference(user_item_matrix, item_feature_matrix, params)

    # Exact (f32) path — must match the reference tightly.
    out = gcn_recommender_forward(user_item_matrix, item_feature_matrix, params)
    out = jax.block_until_ready(out)
    assert out.shape == (num_users, num_items)
    assert jnp.allclose(out, ref, atol=1e-4, rtol=1e-4), "f32 kernel mismatch vs reference"

    # bf16-matmul / f32-accumulate path (MXU / HBM-bandwidth optimized).
    out_bf16 = gcn_recommender_forward(
        user_item_matrix, item_feature_matrix, params, compute_dtype=jnp.bfloat16)
    out_bf16 = jax.block_until_ready(out_bf16)
    assert jnp.allclose(out_bf16, ref, atol=1e-1, rtol=1e-1), "bf16 kernel mismatch vs reference"

    print("KERNEL_OK")
</pallas_src>

<mosaic_0001>
module attributes {stable_mosaic.version = 11 : i64} {
  func.func @_item_side_kernel(%arg0: i32, %arg1: memref<16x128xf32, #tpu.memory_space<vmem>>, %arg2: memref<16x128xf32, #tpu.memory_space<vmem>>, %arg3: memref<128x128xf32, #tpu.memory_space<vmem>>, %arg4: memref<128x1xf32, #tpu.memory_space<vmem>>, %arg5: memref<128x128xf32, #tpu.memory_space<vmem>>, %arg6: memref<1x128xf32, #tpu.memory_space<vmem>>, %arg7: memref<128x128xf32, #tpu.memory_space<vmem>>, %arg8: memref<1x128xf32, #tpu.memory_space<vmem>>, %arg9: memref<128x128xf32, #tpu.memory_space<vmem>>, %arg10: memref<128x128xf32, #tpu.memory_space<vmem>>) attributes {dimension_semantics = [#tpu.dimension_semantics<parallel>], iteration_bounds = array<i64: 1>, scalar_prefetch = 0 : i64, scratch_operands = 0 : i64, tpu.core_type = #tpu.core_type<tc>, window_params = [{transform_indices = @transform_0, window_bounds = array<i64: 16, 128>}, {pipeline_mode = #tpu.pipeline_mode<synchronous>, transform_indices = @transform_1, window_bounds = array<i64: 16, 128>}, {transform_indices = @transform_2, window_bounds = array<i64: 128, 128>}, {transform_indices = @transform_3, window_bounds = array<i64: 128, 1>}, {pipeline_mode = #tpu.pipeline_mode<synchronous>, transform_indices = @transform_4, window_bounds = array<i64: 128, 128>}, {pipeline_mode = #tpu.pipeline_mode<synchronous>, transform_indices = @transform_5, window_bounds = array<i64: 1, 128>}, {pipeline_mode = #tpu.pipeline_mode<synchronous>, transform_indices = @transform_6, window_bounds = array<i64: 128, 128>}, {pipeline_mode = #tpu.pipeline_mode<synchronous>, transform_indices = @transform_7, window_bounds = array<i64: 1, 128>}, {transform_indices = @transform_8, window_bounds = array<i64: 128, 128>}, {transform_indices = @transform_9, window_bounds = array<i64: 128, 128>}]} {
    %c0 = arith.constant 0 : index
    %c0_0 = arith.constant 0 : index
    %0 = vector.load %arg4[%c0, %c0_0] : memref<128x1xf32, #tpu.memory_space<vmem>>, vector<128x1xf32>
    %c0_1 = arith.constant 0 : index
    %c0_2 = arith.constant 0 : index
    %1 = vector.load %arg3[%c0_1, %c0_2] : memref<128x128xf32, #tpu.memory_space<vmem>>, vector<128x128xf32>
    %c0_3 = arith.constant 0 : index
    %c0_4 = arith.constant 0 : index
    %2 = vector.load %arg5[%c0_3, %c0_4] : memref<128x128xf32, #tpu.memory_space<vmem>>, vector<128x128xf32>
    %cst = arith.constant dense<0.000000e+00> : vector<128x128xf32>
    %3 = tpu.matmul %1, %2, %cst {dimension_numbers = #tpu.dot_dimension_numbers<[1], [0], [0], [1], [0, 0, 1, 1], [], []>} : vector<128x128xf32>, vector<128x128xf32>, vector<128x128xf32> -> vector<128x128xf32>
    %c0_5 = arith.constant 0 : index
    %c0_6 = arith.constant 0 : index
    %4 = vector.load %arg6[%c0_5, %c0_6] : memref<1x128xf32, #tpu.memory_space<vmem>>, vector<1x128xf32>
    %5 = vector.broadcast %4 : vector<1x128xf32> to vector<128x128xf32>
    %6 = arith.addf %3, %5 : vector<128x128xf32>
    %7 = vector.broadcast %0 : vector<128x1xf32> to vector<128x128xf32>
    %8 = arith.mulf %7, %6 : vector<128x128xf32>
    %c0_7 = arith.constant 0 : index
    %c0_8 = arith.constant 0 : index
    %9 = vector.load %arg1[%c0_7, %c0_8] : memref<16x128xf32, #tpu.memory_space<vmem>>, vector<16x128xf32>
    %c0_9 = arith.constant 0 : index
    %c0_10 = arith.constant 0 : index
    %10 = vector.load %arg2[%c0_9, %c0_10] : memref<16x128xf32, #tpu.memory_space<vmem>>, vector<16x128xf32>
    %cst_11 = arith.constant dense<0.000000e+00> : vector<128x128xf32>
    %11 = tpu.matmul %9, %10, %cst_11 {dimension_numbers = #tpu.dot_dimension_numbers<[0], [0], [1], [1], [0, 1, 1, 1], [], []>} : vector<16x128xf32>, vector<16x128xf32>, vector<128x128xf32> -> vector<128x128xf32>
    %12 = arith.addf %11, %8 : vector<128x128xf32>
    %13 = vector.broadcast %0 : vector<128x1xf32> to vector<128x128xf32>
    %14 = arith.mulf %13, %12 : vector<128x128xf32>
    %c0_12 = arith.constant 0 : index
    %c0_13 = arith.constant 0 : index
    %15 = vector.load %arg7[%c0_12, %c0_13] : memref<128x128xf32, #tpu.memory_space<vmem>>, vector<128x128xf32>
    %cst_14 = arith.constant dense<0.000000e+00> : vector<128x128xf32>
    %16 = tpu.matmul %14, %15, %cst_14 {dimension_numbers = #tpu.dot_dimension_numbers<[1], [0], [0], [1], [0, 0, 1, 1], [], []>} : vector<128x128xf32>, vector<128x128xf32>, vector<128x128xf32> -> vector<128x128xf32>
    %c0_15 = arith.constant 0 : index
    %c0_16 = arith.constant 0 : index
    %17 = vector.load %arg8[%c0_15, %c0_16] : memref<1x128xf32, #tpu.memory_space<vmem>>, vector<1x128xf32>
    %18 = vector.broadcast %17 : vector<1x128xf32> to vector<128x128xf32>
    %19 = arith.addf %16, %18 : vector<128x128xf32>
    %c0_17 = arith.constant 0 : index
    %c0_18 = arith.constant 0 : index
    %20 = vector.load %arg9[%c0_17, %c0_18] : memref<128x128xf32, #tpu.memory_space<vmem>>, vector<128x128xf32>
    tpu.vector_store %arg9[%c0_17, %c0_18], %8 {strides = array<i32>} : memref<128x128xf32, #tpu.memory_space<vmem>>, vector<128x128xf32>,
    %21 = tpu.transpose %19, [1, 0] : vector<128x128xf32> -> vector<128x128xf32>
    %c0_19 = arith.constant 0 : index
    %c0_20 = arith.constant 0 : index
    %22 = vector.load %arg10[%c0_19, %c0_20] : memref<128x128xf32, #tpu.memory_space<vmem>>, vector<128x128xf32>
    tpu.vector_store %arg10[%c0_19, %c0_20], %21 {strides = array<i32>} : memref<128x128xf32, #tpu.memory_space<vmem>>, vector<128x128xf32>,
    return
  }
  func.func @transform_0(%arg0: i32) -> (i32, i32) {
    %c0_i32 = arith.constant 0 : i32
    %c0_i32_0 = arith.constant 0 : i32
    return %c0_i32, %arg0 : i32, i32
  }
  func.func @transform_1(%arg0: i32) -> (i32, i32) {
    %c0_i32 = arith.constant 0 : i32
    %c0_i32_0 = arith.constant 0 : i32
    %c0_i32_1 = arith.constant 0 : i32
    return %c0_i32, %c0_i32_0 : i32, i32
  }
  func.func @transform_2(%arg0: i32) -> (i32, i32) {
    %c0_i32 = arith.constant 0 : i32
    %c0_i32_0 = arith.constant 0 : i32
    return %arg0, %c0_i32 : i32, i32
  }
  func.func @transform_3(%arg0: i32) -> (i32, i32) {
    %c0_i32 = arith.constant 0 : i32
    %c0_i32_0 = arith.constant 0 : i32
    return %arg0, %c0_i32 : i32, i32
  }
  func.func @transform_4(%arg0: i32) -> (i32, i32) {
    %c0_i32 = arith.constant 0 : i32
    %c0_i32_0 = arith.constant 0 : i32
    %c0_i32_1 = arith.constant 0 : i32
    return %c0_i32, %c0_i32_0 : i32, i32
  }
  func.func @transform_5(%arg0: i32) -> (i32, i32) {
    %c0_i32 = arith.constant 0 : i32
    %c0_i32_0 = arith.constant 0 : i32
    %c0_i32_1 = arith.constant 0 : i32
    return %c0_i32, %c0_i32_0 : i32, i32
  }
  func.func @transform_6(%arg0: i32) -> (i32, i32) {
    %c0_i32 = arith.constant 0 : i32
    %c0_i32_0 = arith.constant 0 : i32
    %c0_i32_1 = arith.constant 0 : i32
    return %c0_i32, %c0_i32_0 : i32, i32
  }
  func.func @transform_7(%arg0: i32) -> (i32, i32) {
    %c0_i32 = arith.constant 0 : i32
    %c0_i32_0 = arith.constant 0 : i32
    %c0_i32_1 = arith.constant 0 : i32
    return %c0_i32, %c0_i32_0 : i32, i32
  }
  func.func @transform_8(%arg0: i32) -> (i32, i32) {
    %c0_i32 = arith.constant 0 : i32
    %c0_i32_0 = arith.constant 0 : i32
    return %arg0, %c0_i32 : i32, i32
  }
  func.func @transform_9(%arg0: i32) -> (i32, i32) {
    %c0_i32 = arith.constant 0 : i32
    %c0_i32_0 = arith.constant 0 : i32
    return %c0_i32, %arg0 : i32, i32
  }
}

</mosaic_0001>

<llo_original>
// kernel: tpu_custom_call.1
$region0: #{tpu_custom_call.1}
  #allocation0 [shape = 'u32[]', space=smem, size = 0x4, offset = 0x4, fixed_abs, tag = 'smem constant byte address 0x4 - core index']
  #allocation1 [shape = 'u32[144,128]{1,0:T(1,128)}', space=vmem, size = 0x12000, scoped, tag = 'internal scratch']
  %s0 = inlined_call_operand.hbm [shape: f32[16,128], index: 0, kind: input, shape index: {}]
  %s1 = inlined_call_operand.hbm [shape: f32[16,128], index: 1, kind: input, shape index: {}]
  %s2 = inlined_call_operand.vmem [shape: f32[128,128], index: 2, kind: input, shape index: {}]
  %s3 = inlined_call_operand.vmem [shape: f32[128,1], index: 3, kind: input, shape index: {}]
  %s4 = inlined_call_operand.hbm [shape: f32[128,128], index: 4, kind: input, shape index: {}]
  %s5 = inlined_call_operand.vmem [shape: f32[1,128], index: 5, kind: input, shape index: {}]
  %s6 = inlined_call_operand.hbm [shape: f32[128,128], index: 6, kind: input, shape index: {}]
  %s7 = inlined_call_operand.vmem [shape: f32[1,128], index: 7, kind: input, shape index: {}]
  %s8 = inlined_call_operand.hbm [shape: f32[128,128], index: 8, kind: output, shape index: {0}]
  %s9 = inlined_call_operand.hbm [shape: f32[128,128], index: 9, kind: output, shape index: {1}]
  %10 = xla_tuple %s8, %s9
  %s11 = sld [smem:[#allocation0]]
  $region66: #{tpu_custom_call.1} parent=0
    _
  %s13 = ssub.s32 1, %s11
  %s14 = scalar_select 0, %s13, %s11
  $region1: #{tpu_custom_call.1} parent=0
    #allocation2 [shape = 'u8[8192]{0}', space=vmem, size = 0x2000, scoped, tag = 'input window, operand 0, single buffered']
    #allocation3 [shape = 's32[1]{0}', space=sflag, size = 0x4, scoped, tag = 'scoped memory for tpu_custom_call.1']
    #allocation4 [shape = 's32[1]{0}', space=sflag, size = 0x4, scoped, tag = 'scoped memory for tpu_custom_call.1']
    #allocation5 [shape = 'u8[8192]{0}', space=vmem, size = 0x2000, scoped, tag = 'input window, operand 1, single buffered']
    #allocation6 [shape = 's32[1]{0}', space=sflag, size = 0x4, scoped, tag = 'scoped memory for tpu_custom_call.1']
    #allocation7 [shape = 'u8[65536]{0}', space=vmem, size = 0x10000, scoped, tag = 'input window, operand 4, single buffered']
    #allocation8 [shape = 'u8[65536]{0}', space=vmem, size = 0x10000, scoped, tag = 'input window, operand 6, single buffered']
    #allocation9 [shape = 's32[1]{0}', space=sflag, size = 0x4, scoped, tag = 'scoped memory for tpu_custom_call.1']
    #allocation10 [shape = 'u8[65536]{0}', space=vmem, size = 0x10000, scoped, tag = 'output window, operand 0, single buffered']
    #allocation11 [shape = 'u8[65536]{0}', space=vmem, size = 0x10000, scoped, tag = 'output window, operand 1, single buffered']
    #allocation12 [shape = 's32[1]{0}', space=sflag, size = 0x4, scoped, tag = 'scoped memory for tpu_custom_call.1']
    %15 = vsyncpa [#allocation3], 0
    %16 = vsyncpa [#allocation6], 0
    %17 = vsyncpa [#allocation9], 0
    %18 = vsyncpa [#allocation4], 0
    %19 = vsyncpa [#allocation12], 0
    // Predicated region
    $region2: #{tpu_custom_call.1} parent=1 // pred_check
      _
    $region3: #{tpu_custom_call.1} parent=1 // pred_check_branch
      %21 = sbr.rel (0) target = $region5
    $region4: #{tpu_custom_call.1} parent=1 // pred_region
      %s23 = ssub.s32 256, 256
      %24 = vsyncadd [#allocation3], %s23
      %s25 = sshll.u32 [#allocation2], 4
      %s26 = int_to_ptr.vmem [resolvable:$true] %s25
      %31 = dma.hbm_to_vmem [thread:$0]  %s0, 256, %s26, [#allocation3], 128, 128, 8
    $region5: #{tpu_custom_call.1} parent=1 // pred_fallthru
      _
    // Predicated region
    $region6: #{tpu_custom_call.1} parent=1 // pred_check
      _
    $region7: #{tpu_custom_call.1} parent=1 // pred_check_branch
      %33 = sbr.rel (0) target = $region9
    $region8: #{tpu_custom_call.1} parent=1 // pred_region
      %s35 = ssub.s32 256, 256
      %36 = vsyncadd [#allocation6], %s35
      %s37 = sshll.u32 [#allocation5], 4
      %s38 = int_to_ptr.vmem [resolvable:$true] %s37
      %43 = dma.hbm_to_vmem [thread:$0]  %s1, 256, %s38, [#allocation6], 128, 128, 8
    $region9: #{tpu_custom_call.1} parent=1 // pred_fallthru
      _
    // Predicated region
    $region10: #{tpu_custom_call.1} parent=1 // pred_check
      _
    $region11: #{tpu_custom_call.1} parent=1 // pred_check_branch
      %45 = sbr.rel (0) target = $region13
    $region12: #{tpu_custom_call.1} parent=1 // pred_region
      _
    $region13: #{tpu_custom_call.1} parent=1 // pred_fallthru
      _
    // Predicated region
    $region14: #{tpu_custom_call.1} parent=1 // pred_check
      _
    $region15: #{tpu_custom_call.1} parent=1 // pred_check_branch
      %47 = sbr.rel (0) target = $region17
    $region16: #{tpu_custom_call.1} parent=1 // pred_region
      _
    $region17: #{tpu_custom_call.1} parent=1 // pred_fallthru
      _
    // Predicated region
    $region18: #{tpu_custom_call.1} parent=1 // pred_check
      _
    $region19: #{tpu_custom_call.1} parent=1 // pred_check_branch
      %49 = sbr.rel (0) target = $region21
    $region20: #{tpu_custom_call.1} parent=1 // pred_region
      %s51 = ssub.s32 2048, 2048
      %52 = vsyncadd [#allocation6], %s51
      %s53 = sshll.u32 [#allocation7], 4
      %s54 = int_to_ptr.vmem [resolvable:$true] %s53
      %59 = dma.hbm_to_vmem [thread:$0]  %s4, 2048, %s54, [#allocation6], 128, 128, 8
    $region21: #{tpu_custom_call.1} parent=1 // pred_fallthru
      _
    // Predicated region
    $region22: #{tpu_custom_call.1} parent=1 // pred_check
      _
    $region23: #{tpu_custom_call.1} parent=1 // pred_check_branch
      %61 = sbr.rel (0) target = $region25
    $region24: #{tpu_custom_call.1} parent=1 // pred_region
      _
    $region25: #{tpu_custom_call.1} parent=1 // pred_fallthru
      _
    // Predicated region
    $region26: #{tpu_custom_call.1} parent=1 // pred_check
      _
    $region27: #{tpu_custom_call.1} parent=1 // pred_check_branch
      %63 = sbr.rel (0) target = $region29
    $region28: #{tpu_custom_call.1} parent=1 // pred_region
      %s65 = ssub.s32 2048, 2048
      %66 = vsyncadd [#allocation9], %s65
      %s67 = sshll.u32 [#allocation8], 4
      %s68 = int_to_ptr.vmem [resolvable:$true] %s67
      %73 = dma.hbm_to_vmem [thread:$0]  %s6, 2048, %s68, [#allocation9], 128, 128, 8
    $region29: #{tpu_custom_call.1} parent=1 // pred_fallthru
      _
    // Predicated region
    $region30: #{tpu_custom_call.1} parent=1 // pred_check
      _
    $region31: #{tpu_custom_call.1} parent=1 // pred_check_branch
      %75 = sbr.rel (0) target = $region33
    $region32: #{tpu_custom_call.1} parent=1 // pred_region
      _
    $region33: #{tpu_custom_call.1} parent=1 // pred_fallthru
      _
    // Predicated region
    $region34: #{tpu_custom_call.1} parent=1 // pred_check
      _
    $region35: #{tpu_custom_call.1} parent=1 // pred_check_branch
      %77 = sbr.rel (0) target = $region37
    $region36: #{tpu_custom_call.1} parent=1 // pred_region
      %78 = dma.done [#allocation3], 256
    $region37: #{tpu_custom_call.1} parent=1 // pred_fallthru
      _
    // Predicated region
    $region38: #{tpu_custom_call.1} parent=1 // pred_check
      _
    $region39: #{tpu_custom_call.1} parent=1 // pred_check_branch
      %80 = sbr.rel (0) target = $region41
    $region40: #{tpu_custom_call.1} parent=1 // pred_region
      %81 = dma.done [#allocation6], 256
    $region41: #{tpu_custom_call.1} parent=1 // pred_fallthru
      _
    // Predicated region
    $region42: #{tpu_custom_call.1} parent=1 // pred_check
      _
    $region43: #{tpu_custom_call.1} parent=1 // pred_check_branch
      %83 = sbr.rel (0) target = $region45
    $region44: #{tpu_custom_call.1} parent=1 // pred_region
      %84 = dma.done [#allocation6], 2048
    $region45: #{tpu_custom_call.1} parent=1 // pred_fallthru
      _
    // Predicated region
    $region46: #{tpu_custom_call.1} parent=1 // pred_check
      _
    $region47: #{tpu_custom_call.1} parent=1 // pred_check_branch
      %86 = sbr.rel (0) target = $region49
    $region48: #{tpu_custom_call.1} parent=1 // pred_region
      %87 = dma.done [#allocation9], 2048
    $region49: #{tpu_custom_call.1} parent=1 // pred_fallthru
      _
    %v88 = vld [vmem:[%s3] sm:$0xff]
    %v89 = vld [vmem:[%s3 + $0x8] sm:$0xff]
    %v90 = vld [vmem:[%s3 + $0x10] sm:$0xff]
    %v91 = vld [vmem:[%s3 + $0x18] sm:$0xff]
    %v92 = vld [vmem:[%s3 + $0x20] sm:$0xff]
    %v93 = vld [vmem:[%s3 + $0x28] sm:$0xff]
    %v94 = vld [vmem:[%s3 + $0x30] sm:$0xff]
    %v95 = vld [vmem:[%s3 + $0x38] sm:$0xff]
    %v96 = vld [vmem:[%s3 + $0x40] sm:$0xff]
    %v97 = vld [vmem:[%s3 + $0x48] sm:$0xff]
    %v98 = vld [vmem:[%s3 + $0x50] sm:$0xff]
    %v99 = vld [vmem:[%s3 + $0x58] sm:$0xff]
    %v100 = vld [vmem:[%s3 + $0x60] sm:$0xff]
    %v101 = vld [vmem:[%s3 + $0x68] sm:$0xff]
    %v102 = vld [vmem:[%s3 + $0x70] sm:$0xff]
    %v103 = vld [vmem:[%s3 + $0x78] sm:$0xff]
    %v104 = vld [vmem:[%s2] sm:$0xff]
    %v105 = vld [vmem:[%s2 + $0x8] sm:$0xff]
    %v106 = vld [vmem:[%s2 + $0x10] sm:$0xff]
    %v107 = vld [vmem:[%s2 + $0x18] sm:$0xff]
    %v108 = vld [vmem:[%s2 + $0x20] sm:$0xff]
    %v109 = vld [vmem:[%s2 + $0x28] sm:$0xff]
    %v110 = vld [vmem:[%s2 + $0x30] sm:$0xff]
    %v111 = vld [vmem:[%s2 + $0x38] sm:$0xff]
    %v112 = vld [vmem:[%s2 + $0x40] sm:$0xff]
    %v113 = vld [vmem:[%s2 + $0x48] sm:$0xff]
    %v114 = vld [vmem:[%s2 + $0x50] sm:$0xff]
    %v115 = vld [vmem:[%s2 + $0x58] sm:$0xff]
    %v116 = vld [vmem:[%s2 + $0x60] sm:$0xff]
    %v117 = vld [vmem:[%s2 + $0x68] sm:$0xff]
    %v118 = vld [vmem:[%s2 + $0x70] sm:$0xff]
    %v119 = vld [vmem:[%s2 + $0x78] sm:$0xff]
    %v120 = vld [vmem:[#allocation7] sm:$0xff]
    %v121 = vld [vmem:[#allocation7 + $0x8] sm:$0xff]
    %v122 = vld [vmem:[#allocation7 + $0x10] sm:$0xff]
    %v123 = vld [vmem:[#allocation7 + $0x18] sm:$0xff]
    %v124 = vld [vmem:[#allocation7 + $0x20] sm:$0xff]
    %v125 = vld [vmem:[#allocation7 + $0x28] sm:$0xff]
    %v126 = vld [vmem:[#allocation7 + $0x30] sm:$0xff]
    %v127 = vld [vmem:[#allocation7 + $0x38] sm:$0xff]
    %v128 = vld [vmem:[#allocation7 + $0x40] sm:$0xff]
    %v129 = vld [vmem:[#allocation7 + $0x48] sm:$0xff]
    %v130 = vld [vmem:[#allocation7 + $0x50] sm:$0xff]
    %v131 = vld [vmem:[#allocation7 + $0x58] sm:$0xff]
    %v132 = vld [vmem:[#allocation7 + $0x60] sm:$0xff]
    %v133 = vld [vmem:[#allocation7 + $0x68] sm:$0xff]
    %v134 = vld [vmem:[#allocation7 + $0x70] sm:$0xff]
    %v135 = vld [vmem:[#allocation7 + $0x78] sm:$0xff]
    %v136 = vld [vmem:[%s5] sm:$0x1]
    %v138 = vlaneseq
    %v139 = vshrl.u32 %v138, 7
    %v140 = vsub.s32 0, %v139
    %v141 = vrot.slane %v136, %v140
    %143 = vmatprep.subr.mxu0 0.0
    %144 = vmatpush1.msra.mxu0 %v135
    %145 = vmatprep.subr.mxu0 0.0
    %146 = vmatpush1.msra.mxu0 %v134
    %147 = vmatprep.subr.mxu0 0.0
    %148 = vmatpush1.msra.mxu0 %v133
    %149 = vmatprep.subr.mxu0 0.0
    %150 = vmatpush1.msra.mxu0 %v132
    %151 = vmatprep.subr.mxu0 0.0
    %152 = vmatpush1.msra.mxu0 %v131
    %153 = vmatprep.subr.mxu0 0.0
    %154 = vmatpush1.msra.mxu0 %v130
    %155 = vmatprep.subr.mxu0 0.0
    %156 = vmatpush1.msra.mxu0 %v129
    %157 = vmatprep.subr.mxu0 0.0
    %158 = vmatpush1.msra.mxu0 %v128
    %159 = vmatprep.subr.mxu0 0.0
    %160 = vmatpush1.msra.mxu0 %v127
    %161 = vmatprep.subr.mxu0 0.0
    %162 = vmatpush1.msra.mxu0 %v126
    %163 = vmatprep.subr.mxu0 0.0
    %164 = vmatpush1.msra.mxu0 %v125
    %165 = vmatprep.subr.mxu0 0.0
    %166 = vmatpush1.msra.mxu0 %v124
    %167 = vmatprep.subr.mxu0 0.0
    %168 = vmatpush1.msra.mxu0 %v123
    %169 = vmatprep.subr.mxu0 0.0
    %170 = vmatpush1.msra.mxu0 %v122
    %171 = vmatprep.subr.mxu0 0.0
    %172 = vmatpush1.msra.mxu0 %v121
    %173 = vmatprep.subr.mxu0 0.0
    %174 = vmatpush1.msra.mxu0 %v120
    %175 = vmatprep.subr.mxu0 0.0
    %176 = vmatpush2.msra.mxu0 0.0
    %177 = vmatprep.subr.mxu0 0.0
    %178 = vmatpush2.msra.mxu0 0.0
    %179 = vmatprep.subr.mxu0 0.0
    %180 = vmatpush2.msra.mxu0 0.0
    %181 = vmatprep.subr.mxu0 0.0
    %182 = vmatpush2.msra.mxu0 0.0
    %183 = vmatprep.subr.mxu0 0.0
    %184 = vmatpush2.msra.mxu0 0.0
    %185 = vmatprep.subr.mxu0 0.0
    %186 = vmatpush2.msra.mxu0 0.0
    %187 = vmatprep.subr.mxu0 0.0
    %188 = vmatpush2.msra.mxu0 0.0
    %189 = vmatprep.subr.mxu0 0.0
    %190 = vmatpush2.msra.mxu0 0.0
    %191 = vmatprep.subr.mxu0 0.0
    %192 = vmatpush2.msra.mxu0 0.0
    %193 = vmatprep.subr.mxu0 0.0
    %194 = vmatpush2.msra.mxu0 0.0
    %195 = vmatprep.subr.mxu0 0.0
    %196 = vmatpush2.msra.mxu0 0.0
    %197 = vmatprep.subr.mxu0 0.0
    %198 = vmatpush2.msra.mxu0 0.0
    %199 = vmatprep.subr.mxu0 0.0
    %200 = vmatpush2.msra.mxu0 0.0
    %201 = vmatprep.subr.mxu0 0.0
    %202 = vmatpush2.msra.mxu0 0.0
    %203 = vmatprep.subr.mxu0 0.0
    %204 = vmatpush2.msra.mxu0 0.0
    %205 = vmatprep.subr.mxu0 0.0
    %206 = vmatpush2.msra.mxu0 0.0
    %207 = vmatprep.mubr.f32.mxu0 0.0
    %208 = vmatmul.mubr.f32.gmra.mxu0 %v104
    %v209 = vpop.f32.mrf.mxu0
    %v210 = vadd.f32 %v141, %v209
    %v211 = vpop.f32.mrf.mxu0
    %212 = vmatprep.mubr.f32.mxu0 0.0
    %213 = vmatmul.mubr.f32.gmra.mxu0 %v105
    %v214 = vpop.f32.mrf.mxu0
    %v215 = vadd.f32 %v141, %v214
    %v216 = vpop.f32.mrf.mxu0
    %217 = vmatprep.mubr.f32.mxu0 0.0
    %218 = vmatmul.mubr.f32.gmra.mxu0 %v106
    %v219 = vpop.f32.mrf.mxu0
    %v220 = vadd.f32 %v141, %v219
    %v221 = vpop.f32.mrf.mxu0
    %222 = vmatprep.mubr.f32.mxu0 0.0
    %223 = vmatmul.mubr.f32.gmra.mxu0 %v107
    %v224 = vpop.f32.mrf.mxu0
    %v225 = vadd.f32 %v141, %v224
    %v226 = vpop.f32.mrf.mxu0
    %227 = vmatprep.mubr.f32.mxu0 0.0
    %228 = vmatmul.mubr.f32.gmra.mxu0 %v108
    %v229 = vpop.f32.mrf.mxu0
    %v230 = vadd.f32 %v141, %v229
    %v231 = vpop.f32.mrf.mxu0
    %232 = vmatprep.mubr.f32.mxu0 0.0
    %233 = vmatmul.mubr.f32.gmra.mxu0 %v109
    %v234 = vpop.f32.mrf.mxu0
    %v235 = vadd.f32 %v141, %v234
    %v236 = vpop.f32.mrf.mxu0
    %237 = vmatprep.mubr.f32.mxu0 0.0
    %238 = vmatmul.mubr.f32.gmra.mxu0 %v110
    %v239 = vpop.f32.mrf.mxu0
    %v240 = vadd.f32 %v141, %v239
    %v241 = vpop.f32.mrf.mxu0
    %242 = vmatprep.mubr.f32.mxu0 0.0
    %243 = vmatmul.mubr.f32.gmra.mxu0 %v111
    %v244 = vpop.f32.mrf.mxu0
    %v245 = vadd.f32 %v141, %v244
    %v246 = vpop.f32.mrf.mxu0
    %247 = vmatprep.mubr.f32.mxu0 0.0
    %248 = vmatmul.mubr.f32.gmra.mxu0 %v112
    %v249 = vpop.f32.mrf.mxu0
    %v250 = vadd.f32 %v141, %v249
    %v251 = vpop.f32.mrf.mxu0
    %252 = vmatprep.mubr.f32.mxu0 0.0
    %253 = vmatmul.mubr.f32.gmra.mxu0 %v113
    %v254 = vpop.f32.mrf.mxu0
    %v255 = vadd.f32 %v141, %v254
    %v256 = vpop.f32.mrf.mxu0
    %257 = vmatprep.mubr.f32.mxu0 0.0
    %258 = vmatmul.mubr.f32.gmra.mxu0 %v114
    %v259 = vpop.f32.mrf.mxu0
    %v260 = vadd.f32 %v141, %v259
    %v261 = vpop.f32.mrf.mxu0
    %262 = vmatprep.mubr.f32.mxu0 0.0
    %263 = vmatmul.mubr.f32.gmra.mxu0 %v115
    %v264 = vpop.f32.mrf.mxu0
    %v265 = vadd.f32 %v141, %v264
    %v266 = vpop.f32.mrf.mxu0
    %267 = vmatprep.mubr.f32.mxu0 0.0
    %268 = vmatmul.mubr.f32.gmra.mxu0 %v116
    %v269 = vpop.f32.mrf.mxu0
    %v270 = vadd.f32 %v141, %v269
    %v271 = vpop.f32.mrf.mxu0
    %272 = vmatprep.mubr.f32.mxu0 0.0
    %273 = vmatmul.mubr.f32.gmra.mxu0 %v117
    %v274 = vpop.f32.mrf.mxu0
    %v275 = vadd.f32 %v141, %v274
    %v276 = vpop.f32.mrf.mxu0
    %277 = vmatprep.mubr.f32.mxu0 0.0
    %278 = vmatmul.mubr.f32.gmra.mxu0 %v118
    %v279 = vpop.f32.mrf.mxu0
    %v280 = vadd.f32 %v141, %v279
    %v281 = vpop.f32.mrf.mxu0
    %282 = vmatprep.mubr.f32.mxu0 0.0
    %283 = vmatmul.mubr.f32.gmra.mxu0 %v119
    %v284 = vpop.f32.mrf.mxu0
    %v285 = vadd.f32 %v141, %v284
    %v286 = vpop.f32.mrf.mxu0
    %287 = vdwg.mxu0
    %289 = vset.pattern.permute.xlu0 0
    %290 = vperm.xlu0 %289, %v88
    %v291 = vpop.permute.xlu0 %290
    %294 = vset.pattern.permute.xlu0 0
    %295 = vperm.xlu0 %294, %v89
    %v296 = vpop.permute.xlu0 %295
    %299 = vset.pattern.permute.xlu0 0
    %300 = vperm.xlu0 %299, %v90
    %v301 = vpop.permute.xlu0 %300
    %304 = vset.pattern.permute.xlu0 0
    %305 = vperm.xlu0 %304, %v91
    %v306 = vpop.permute.xlu0 %305
    %309 = vset.pattern.permute.xlu0 0
    %310 = vperm.xlu0 %309, %v92
    %v311 = vpop.permute.xlu0 %310
    %314 = vset.pattern.permute.xlu0 0
    %315 = vperm.xlu0 %314, %v93
    %v316 = vpop.permute.xlu0 %315
    %319 = vset.pattern.permute.xlu0 0
    %320 = vperm.xlu0 %319, %v94
    %v321 = vpop.permute.xlu0 %320
    %324 = vset.pattern.permute.xlu0 0
    %325 = vperm.xlu0 %324, %v95
    %v326 = vpop.permute.xlu0 %325
    %329 = vset.pattern.permute.xlu0 0
    %330 = vperm.xlu0 %329, %v96
    %v331 = vpop.permute.xlu0 %330
    %334 = vset.pattern.permute.xlu0 0
    %335 = vperm.xlu0 %334, %v97
    %v336 = vpop.permute.xlu0 %335
    %339 = vset.pattern.permute.xlu0 0
    %340 = vperm.xlu0 %339, %v98
    %v341 = vpop.permute.xlu0 %340
    %344 = vset.pattern.permute.xlu0 0
    %345 = vperm.xlu0 %344, %v99
    %v346 = vpop.permute.xlu0 %345
    %349 = vset.pattern.permute.xlu0 0
    %350 = vperm.xlu0 %349, %v100
    %v351 = vpop.permute.xlu0 %350
    %354 = vset.pattern.permute.xlu0 0
    %355 = vperm.xlu0 %354, %v101
    %v356 = vpop.permute.xlu0 %355
    %359 = vset.pattern.permute.xlu0 0
    %360 = vperm.xlu0 %359, %v102
    %v361 = vpop.permute.xlu0 %360
    %364 = vset.pattern.permute.xlu0 0
    %365 = vperm.xlu0 %364, %v103
    %v366 = vpop.permute.xlu0 %365
    %v368 = vmul.f32 %v291, %v210
    %v369 = vmul.f32 %v296, %v215
    %v370 = vmul.f32 %v301, %v220
    %v371 = vmul.f32 %v306, %v225
    %v372 = vmul.f32 %v311, %v230
    %v373 = vmul.f32 %v316, %v235
    %v374 = vmul.f32 %v321, %v240
    %v375 = vmul.f32 %v326, %v245
    %v376 = vmul.f32 %v331, %v250
    %v377 = vmul.f32 %v336, %v255
    %v378 = vmul.f32 %v341, %v260
    %v379 = vmul.f32 %v346, %v265
    %v380 = vmul.f32 %v351, %v270
    %v381 = vmul.f32 %v356, %v275
    %v382 = vmul.f32 %v361, %v280
    %v383 = vmul.f32 %v366, %v285
    %v384 = vld [vmem:[#allocation2] sm:$0xff]
    %v385 = vld [vmem:[#allocation2 + $0x8] sm:$0xff]
    %v386 = vld [vmem:[#allocation5] sm:$0xff]
    %v387 = vld [vmem:[#allocation5 + $0x8] sm:$0xff]
    %388 = vxpose.xlu0.b32.start [1/16] %v384, 128
    %389 = vxpose.xlu0.b32.cont [2/16] %v385, 128
    %390 = vxpose.xlu0.b32.cont [3/16] 0.0, 128
    %391 = vxpose.xlu0.b32.cont [4/16] 0.0, 128
    %392 = vxpose.xlu0.b32.cont [5/16] 0.0, 128
    %393 = vxpose.xlu0.b32.cont [6/16] 0.0, 128
    %394 = vxpose.xlu0.b32.cont [7/16] 0.0, 128
    %395 = vxpose.xlu0.b32.cont [8/16] 0.0, 128
    %396 = vxpose.xlu0.b32.cont [9/16] 0.0, 128
    %397 = vxpose.xlu0.b32.cont [10/16] 0.0, 128
    %398 = vxpose.xlu0.b32.cont [11/16] 0.0, 128
    %399 = vxpose.xlu0.b32.cont [12/16] 0.0, 128
    %400 = vxpose.xlu0.b32.cont [13/16] 0.0, 128
    %401 = vxpose.xlu0.b32.cont [14/16] 0.0, 128
    %402 = vxpose.xlu0.b32.cont [15/16] 0.0, 128
    %403 = vxpose.xlu0.b32.end [16/16] 0.0, 128
    %v404 = vpop.trf.xlu0
    %v405 = vpop.trf.xlu0
    %v406 = vpop.trf.xlu0
    %v407 = vpop.trf.xlu0
    %v408 = vpop.trf.xlu0
    %v409 = vpop.trf.xlu0
    %v410 = vpop.trf.xlu0
    %v411 = vpop.trf.xlu0
    %v412 = vpop.trf.xlu0
    %v413 = vpop.trf.xlu0
    %v414 = vpop.trf.xlu0
    %v415 = vpop.trf.xlu0
    %v416 = vpop.trf.xlu0
    %v417 = vpop.trf.xlu0
    %v418 = vpop.trf.xlu0
    %v419 = vpop.trf.xlu0
    %vm420 = vcmask 130048
    %v422 = vsel %vm420, %v404, 0
    %v425 = vsel %vm420, %v405, 0
    %v428 = vsel %vm420, %v406, 0
    %v431 = vsel %vm420, %v407, 0
    %v434 = vsel %vm420, %v408, 0
    %v437 = vsel %vm420, %v409, 0
    %v440 = vsel %vm420, %v410, 0
    %v443 = vsel %vm420, %v411, 0
    %v446 = vsel %vm420, %v412, 0
    %v449 = vsel %vm420, %v413, 0
    %v452 = vsel %vm420, %v414, 0
    %v455 = vsel %vm420, %v415, 0
    %v458 = vsel %vm420, %v416, 0
    %v461 = vsel %vm420, %v417, 0
    %v464 = vsel %vm420, %v418, 0
    %v467 = vsel %vm420, %v419, 0
    %469 = vmatprep.subr.mxu0 0.0
    %470 = vmatpush1.msra.mxu0 0.0
    %471 = vmatprep.subr.mxu0 0.0
    %472 = vmatpush1.msra.mxu0 0.0
    %473 = vmatprep.subr.mxu0 0.0
    %474 = vmatpush1.msra.mxu0 0.0
    %475 = vmatprep.subr.mxu0 0.0
    %476 = vmatpush1.msra.mxu0 0.0
    %477 = vmatprep.subr.mxu0 0.0
    %478 = vmatpush1.msra.mxu0 0.0
    %479 = vmatprep.subr.mxu0 0.0
    %480 = vmatpush1.msra.mxu0 0.0
    %481 = vmatprep.subr.mxu0 0.0
    %482 = vmatpush1.msra.mxu0 0.0
    %483 = vmatprep.subr.mxu0 0.0
    %484 = vmatpush1.msra.mxu0 0.0
    %485 = vmatprep.subr.mxu0 0.0
    %486 = vmatpush1.msra.mxu0 0.0
    %487 = vmatprep.subr.mxu0 0.0
    %488 = vmatpush1.msra.mxu0 0.0
    %489 = vmatprep.subr.mxu0 0.0
    %490 = vmatpush1.msra.mxu0 0.0
    %491 = vmatprep.subr.mxu0 0.0
    %492 = vmatpush1.msra.mxu0 0.0
    %493 = vmatprep.subr.mxu0 0.0
    %494 = vmatpush1.msra.mxu0 0.0
    %495 = vmatprep.subr.mxu0 0.0
    %496 = vmatpush1.msra.mxu0 0.0
    %497 = vmatprep.subr.mxu0 0.0
    %498 = vmatpush1.msra.mxu0 %v387
    %499 = vmatprep.subr.mxu0 0.0
    %500 = vmatpush1.msra.mxu0 %v386
    %501 = vmatprep.subr.mxu0 0.0
    %502 = vmatpush2.msra.mxu0 0.0
    %503 = vmatprep.subr.mxu0 0.0
    %504 = vmatpush2.msra.mxu0 0.0
    %505 = vmatprep.subr.mxu0 0.0
    %506 = vmatpush2.msra.mxu0 0.0
    %507 = vmatprep.subr.mxu0 0.0
    %508 = vmatpush2.msra.mxu0 0.0
    %509 = vmatprep.subr.mxu0 0.0
    %510 = vmatpush2.msra.mxu0 0.0
    %511 = vmatprep.subr.mxu0 0.0
    %512 = vmatpush2.msra.mxu0 0.0
    %513 = vmatprep.subr.mxu0 0.0
    %514 = vmatpush2.msra.mxu0 0.0
    %515 = vmatprep.subr.mxu0 0.0
    %516 = vmatpush2.msra.mxu0 0.0
    %517 = vmatprep.subr.mxu0 0.0
    %518 = vmatpush2.msra.mxu0 0.0
    %519 = vmatprep.subr.mxu0 0.0
    %520 = vmatpush2.msra.mxu0 0.0
    %521 = vmatprep.subr.mxu0 0.0
    %522 = vmatpush2.msra.mxu0 0.0
    %523 = vmatprep.subr.mxu0 0.0
    %524 = vmatpush2.msra.mxu0 0.0
    %525 = vmatprep.subr.mxu0 0.0
    %526 = vmatpush2.msra.mxu0 0.0
    %527 = vmatprep.subr.mxu0 0.0
    %528 = vmatpush2.msra.mxu0 0.0
    %529 = vmatprep.subr.mxu0 0.0
    %530 = vmatpush2.msra.mxu0 0.0
    %531 = vmatprep.subr.mxu0 0.0
    %532 = vmatpush2.msra.mxu0 0.0
    %533 = vmatprep.mubr.f32.mxu0 0.0
    %534 = vmatmul.mubr.f32.gmra.mxu0 %v422
    %v535 = vpop.f32.mrf.mxu0
    %v536 = vadd.f32 %v368, %v535
    %v537 = vpop.f32.mrf.mxu0
    %538 = vmatprep.mubr.f32.mxu0 0.0
    %539 = vmatmul.mubr.f32.gmra.mxu0 %v425
    %v540 = vpop.f32.mrf.mxu0
    %v541 = vadd.f32 %v369, %v540
    %v542 = vpop.f32.mrf.mxu0
    %543 = vmatprep.mubr.f32.mxu0 0.0
    %544 = vmatmul.mubr.f32.gmra.mxu0 %v428
    %v545 = vpop.f32.mrf.mxu0
    %v546 = vadd.f32 %v370, %v545
    %v547 = vpop.f32.mrf.mxu0
    %548 = vmatprep.mubr.f32.mxu0 0.0
    %549 = vmatmul.mubr.f32.gmra.mxu0 %v431
    %v550 = vpop.f32.mrf.mxu0
    %v551 = vadd.f32 %v371, %v550
    %v552 = vpop.f32.mrf.mxu0
    %553 = vmatprep.mubr.f32.mxu0 0.0
    %554 = vmatmul.mubr.f32.gmra.mxu0 %v434
    %v555 = vpop.f32.mrf.mxu0
    %v556 = vadd.f32 %v372, %v555
    %v557 = vpop.f32.mrf.mxu0
    %558 = vmatprep.mubr.f32.mxu0 0.0
    %559 = vmatmul.mubr.f32.gmra.mxu0 %v437
    %v560 = vpop.f32.mrf.mxu0
    %v561 = vadd.f32 %v373, %v560
    %v562 = vpop.f32.mrf.mxu0
    %563 = vmatprep.mubr.f32.mxu0 0.0
    %564 = vmatmul.mubr.f32.gmra.mxu0 %v440
    %v565 = vpop.f32.mrf.mxu0
    %v566 = vadd.f32 %v374, %v565
    %v567 = vpop.f32.mrf.mxu0
    %568 = vmatprep.mubr.f32.mxu0 0.0
    %569 = vmatmul.mubr.f32.gmra.mxu0 %v443
    %v570 = vpop.f32.mrf.mxu0
    %v571 = vadd.f32 %v375, %v570
    %v572 = vpop.f32.mrf.mxu0
    %573 = vmatprep.mubr.f32.mxu0 0.0
    %574 = vmatmul.mubr.f32.gmra.mxu0 %v446
    %v575 = vpop.f32.mrf.mxu0
    %v576 = vadd.f32 %v376, %v575
    %v577 = vpop.f32.mrf.mxu0
    %578 = vmatprep.mubr.f32.mxu0 0.0
    %579 = vmatmul.mubr.f32.gmra.mxu0 %v449
    %v580 = vpop.f32.mrf.mxu0
    %v581 = vadd.f32 %v377, %v580
    %v582 = vpop.f32.mrf.mxu0
    %583 = vmatprep.mubr.f32.mxu0 0.0
    %584 = vmatmul.mubr.f32.gmra.mxu0 %v452
    %v585 = vpop.f32.mrf.mxu0
    %v586 = vadd.f32 %v378, %v585
    %v587 = vpop.f32.mrf.mxu0
    %588 = vmatprep.mubr.f32.mxu0 0.0
    %589 = vmatmul.mubr.f32.gmra.mxu0 %v455
    %v590 = vpop.f32.mrf.mxu0
    %v591 = vadd.f32 %v379, %v590
    %v592 = vpop.f32.mrf.mxu0
    %593 = vmatprep.mubr.f32.mxu0 0.0
    %594 = vmatmul.mubr.f32.gmra.mxu0 %v458
    %v595 = vpop.f32.mrf.mxu0
    %v596 = vadd.f32 %v380, %v595
    %v597 = vpop.f32.mrf.mxu0
    %598 = vmatprep.mubr.f32.mxu0 0.0
    %599 = vmatmul.mubr.f32.gmra.mxu0 %v461
    %v600 = vpop.f32.mrf.mxu0
    %v601 = vadd.f32 %v381, %v600
    %v602 = vpop.f32.mrf.mxu0
    %603 = vmatprep.mubr.f32.mxu0 0.0
    %604 = vmatmul.mubr.f32.gmra.mxu0 %v464
    %v605 = vpop.f32.mrf.mxu0
    %v606 = vadd.f32 %v382, %v605
    %v607 = vpop.f32.mrf.mxu0
    %608 = vmatprep.mubr.f32.mxu0 0.0
    %609 = vmatmul.mubr.f32.gmra.mxu0 %v467
    %v610 = vpop.f32.mrf.mxu0
    %v611 = vadd.f32 %v383, %v610
    %v612 = vpop.f32.mrf.mxu0
    %613 = vdwg.mxu0
    %v614 = vmul.f32 %v291, %v536
    %v615 = vmul.f32 %v296, %v541
    %v616 = vmul.f32 %v301, %v546
    %v617 = vmul.f32 %v306, %v551
    %v618 = vmul.f32 %v311, %v556
    %v619 = vmul.f32 %v316, %v561
    %v620 = vmul.f32 %v321, %v566
    %v621 = vmul.f32 %v326, %v571
    %v622 = vmul.f32 %v331, %v576
    %v623 = vmul.f32 %v336, %v581
    %v624 = vmul.f32 %v341, %v586
    %v625 = vmul.f32 %v346, %v591
    %v626 = vmul.f32 %v351, %v596
    %v627 = vmul.f32 %v356, %v601
    %v628 = vmul.f32 %v361, %v606
    %v629 = vmul.f32 %v366, %v611
    %v630 = vld [vmem:[#allocation8] sm:$0xff]
    %v631 = vld [vmem:[#allocation8 + $0x8] sm:$0xff]
    %v632 = vld [vmem:[#allocation8 + $0x10] sm:$0xff]
    %v633 = vld [vmem:[#allocation8 + $0x18] sm:$0xff]
    %v634 = vld [vmem:[#allocation8 + $0x20] sm:$0xff]
    %v635 = vld [vmem:[#allocation8 + $0x28] sm:$0xff]
    %v636 = vld [vmem:[#allocation8 + $0x30] sm:$0xff]
    %v637 = vld [vmem:[#allocation8 + $0x38] sm:$0xff]
    %v638 = vld [vmem:[#allocation8 + $0x40] sm:$0xff]
    %v639 = vld [vmem:[#allocation8 + $0x48] sm:$0xff]
    %v640 = vld [vmem:[#allocation8 + $0x50] sm:$0xff]
    %v641 = vld [vmem:[#allocation8 + $0x58] sm:$0xff]
    %v642 = vld [vmem:[#allocation8 + $0x60] sm:$0xff]
    %v643 = vld [vmem:[#allocation8 + $0x68] sm:$0xff]
    %v644 = vld [vmem:[#allocation8 + $0x70] sm:$0xff]
    %v645 = vld [vmem:[#allocation8 + $0x78] sm:$0xff]
    %v646 = vld [vmem:[%s7] sm:$0x1]
    %v648 = vlaneseq
    %v649 = vshrl.u32 %v648, 7
    %v650 = vsub.s32 0, %v649
    %v651 = vrot.slane %v646, %v650
    %653 = vmatprep.subr.mxu0 0.0
    %654 = vmatpush1.msra.mxu0 %v645
    %655 = vmatprep.subr.mxu0 0.0
    %656 = vmatpush1.msra.mxu0 %v644
    %657 = vmatprep.subr.mxu0 0.0
    %658 = vmatpush1.msra.mxu0 %v643
    %659 = vmatprep.subr.mxu0 0.0
    %660 = vmatpush1.msra.mxu0 %v642
    %661 = vmatprep.subr.mxu0 0.0
    %662 = vmatpush1.msra.mxu0 %v641
    %663 = vmatprep.subr.mxu0 0.0
    %664 = vmatpush1.msra.mxu0 %v640
    %665 = vmatprep.subr.mxu0 0.0
    %666 = vmatpush1.msra.mxu0 %v639
    %667 = vmatprep.subr.mxu0 0.0
    %668 = vmatpush1.msra.mxu0 %v638
    %669 = vmatprep.subr.mxu0 0.0
    %670 = vmatpush1.msra.mxu0 %v637
    %671 = vmatprep.subr.mxu0 0.0
    %672 = vmatpush1.msra.mxu0 %v636
    %673 = vmatprep.subr.mxu0 0.0
    %674 = vmatpush1.msra.mxu0 %v635
    %675 = vmatprep.subr.mxu0 0.0
    %676 = vmatpush1.msra.mxu0 %v634
    %677 = vmatprep.subr.mxu0 0.0
    %678 = vmatpush1.msra.mxu0 %v633
    %679 = vmatprep.subr.mxu0 0.0
    %680 = vmatpush1.msra.mxu0 %v632
    %681 = vmatprep.subr.mxu0 0.0
    %682 = vmatpush1.msra.mxu0 %v631
    %683 = vmatprep.subr.mxu0 0.0
    %684 = vmatpush1.msra.mxu0 %v630
    %685 = vmatprep.subr.mxu0 0.0
    %686 = vmatpush2.msra.mxu0 0.0
    %687 = vmatprep.subr.mxu0 0.0
    %688 = vmatpush2.msra.mxu0 0.0
    %689 = vmatprep.subr.mxu0 0.0
    %690 = vmatpush2.msra.mxu0 0.0
    %691 = vmatprep.subr.mxu0 0.0
    %692 = vmatpush2.msra.mxu0 0.0
    %693 = vmatprep.subr.mxu0 0.0
    %694 = vmatpush2.msra.mxu0 0.0
    %695 = vmatprep.subr.mxu0 0.0
    %696 = vmatpush2.msra.mxu0 0.0
    %697 = vmatprep.subr.mxu0 0.0
    %698 = vmatpush2.msra.mxu0 0.0
    %699 = vmatprep.subr.mxu0 0.0
    %700 = vmatpush2.msra.mxu0 0.0
    %701 = vmatprep.subr.mxu0 0.0
    %702 = vmatpush2.msra.mxu0 0.0
    %703 = vmatprep.subr.mxu0 0.0
    %704 = vmatpush2.msra.mxu0 0.0
    %705 = vmatprep.subr.mxu0 0.0
    %706 = vmatpush2.msra.mxu0 0.0
    %707 = vmatprep.subr.mxu0 0.0
    %708 = vmatpush2.msra.mxu0 0.0
    %709 = vmatprep.subr.mxu0 0.0
    %710 = vmatpush2.msra.mxu0 0.0
    %711 = vmatprep.subr.mxu0 0.0
    %712 = vmatpush2.msra.mxu0 0.0
    %713 = vmatprep.subr.mxu0 0.0
    %714 = vmatpush2.msra.mxu0 0.0
    %715 = vmatprep.subr.mxu0 0.0
    %716 = vmatpush2.msra.mxu0 0.0
    %717 = vmatprep.mubr.f32.mxu0 0.0
    %718 = vmatmul.mubr.f32.gmra.mxu0 %v614
    %v719 = vpop.f32.mrf.mxu0
    %v720 = vadd.f32 %v651, %v719
    %v721 = vpop.f32.mrf.mxu0
    %722 = vmatprep.mubr.f32.mxu0 0.0
    %723 = vmatmul.mubr.f32.gmra.mxu0 %v615
    %v724 = vpop.f32.mrf.mxu0
    %v725 = vadd.f32 %v651, %v724
    %v726 = vpop.f32.mrf.mxu0
    %727 = vmatprep.mubr.f32.mxu0 0.0
    %728 = vmatmul.mubr.f32.gmra.mxu0 %v616
    %v729 = vpop.f32.mrf.mxu0
    %v730 = vadd.f32 %v651, %v729
    %v731 = vpop.f32.mrf.mxu0
    %732 = vmatprep.mubr.f32.mxu0 0.0
    %733 = vmatmul.mubr.f32.gmra.mxu0 %v617
    %v734 = vpop.f32.mrf.mxu0
    %v735 = vadd.f32 %v651, %v734
    %v736 = vpop.f32.mrf.mxu0
    %737 = vmatprep.mubr.f32.mxu0 0.0
    %738 = vmatmul.mubr.f32.gmra.mxu0 %v618
    %v739 = vpop.f32.mrf.mxu0
    %v740 = vadd.f32 %v651, %v739
    %v741 = vpop.f32.mrf.mxu0
    %742 = vmatprep.mubr.f32.mxu0 0.0
    %743 = vmatmul.mubr.f32.gmra.mxu0 %v619
    %v744 = vpop.f32.mrf.mxu0
    %v745 = vadd.f32 %v651, %v744
    %v746 = vpop.f32.mrf.mxu0
    %747 = vmatprep.mubr.f32.mxu0 0.0
    %748 = vmatmul.mubr.f32.gmra.mxu0 %v620
    %v749 = vpop.f32.mrf.mxu0
    %v750 = vadd.f32 %v651, %v749
    %v751 = vpop.f32.mrf.mxu0
    %752 = vmatprep.mubr.f32.mxu0 0.0
    %753 = vmatmul.mubr.f32.gmra.mxu0 %v621
    %v754 = vpop.f32.mrf.mxu0
    %v755 = vadd.f32 %v651, %v754
    %v756 = vpop.f32.mrf.mxu0
    %757 = vmatprep.mubr.f32.mxu0 0.0
    %758 = vmatmul.mubr.f32.gmra.mxu0 %v622
    %v759 = vpop.f32.mrf.mxu0
    %v760 = vadd.f32 %v651, %v759
    %v761 = vpop.f32.mrf.mxu0
    %762 = vmatprep.mubr.f32.mxu0 0.0
    %763 = vmatmul.mubr.f32.gmra.mxu0 %v623
    %v764 = vpop.f32.mrf.mxu0
    %v765 = vadd.f32 %v651, %v764
    %v766 = vpop.f32.mrf.mxu0
    %767 = vmatprep.mubr.f32.mxu0 0.0
    %768 = vmatmul.mubr.f32.gmra.mxu0 %v624
    %v769 = vpop.f32.mrf.mxu0
    %v770 = vadd.f32 %v651, %v769
    %v771 = vpop.f32.mrf.mxu0
    %772 = vmatprep.mubr.f32.mxu0 0.0
    %773 = vmatmul.mubr.f32.gmra.mxu0 %v625
    %v774 = vpop.f32.mrf.mxu0
    %v775 = vadd.f32 %v651, %v774
    %v776 = vpop.f32.mrf.mxu0
    %777 = vmatprep.mubr.f32.mxu0 0.0
    %778 = vmatmul.mubr.f32.gmra.mxu0 %v626
    %v779 = vpop.f32.mrf.mxu0
    %v780 = vadd.f32 %v651, %v779
    %v781 = vpop.f32.mrf.mxu0
    %782 = vmatprep.mubr.f32.mxu0 0.0
    %783 = vmatmul.mubr.f32.gmra.mxu0 %v627
    %v784 = vpop.f32.mrf.mxu0
    %v785 = vadd.f32 %v651, %v784
    %v786 = vpop.f32.mrf.mxu0
    %787 = vmatprep.mubr.f32.mxu0 0.0
    %788 = vmatmul.mubr.f32.gmra.mxu0 %v628
    %v789 = vpop.f32.mrf.mxu0
    %v790 = vadd.f32 %v651, %v789
    %v791 = vpop.f32.mrf.mxu0
    %792 = vmatprep.mubr.f32.mxu0 0.0
    %793 = vmatmul.mubr.f32.gmra.mxu0 %v629
    %v794 = vpop.f32.mrf.mxu0
    %v795 = vadd.f32 %v651, %v794
    %v796 = vpop.f32.mrf.mxu0
    %797 = vdwg.mxu0
    %798 = vst [vmem:[#allocation10] sm:$0xff] %v368
    %799 = vst [vmem:[#allocation10 + $0x8] sm:$0xff] %v369
    %800 = vst [vmem:[#allocation10 + $0x10] sm:$0xff] %v370
    %801 = vst [vmem:[#allocation10 + $0x18] sm:$0xff] %v371
    %802 = vst [vmem:[#allocation10 + $0x20] sm:$0xff] %v372
    %803 = vst [vmem:[#allocation10 + $0x28] sm:$0xff] %v373
    %804 = vst [vmem:[#allocation10 + $0x30] sm:$0xff] %v374
    %805 = vst [vmem:[#allocation10 + $0x38] sm:$0xff] %v375
    %806 = vst [vmem:[#allocation10 + $0x40] sm:$0xff] %v376
    %807 = vst [vmem:[#allocation10 + $0x48] sm:$0xff] %v377
    %808 = vst [vmem:[#allocation10 + $0x50] sm:$0xff] %v378
    %809 = vst [vmem:[#allocation10 + $0x58] sm:$0xff] %v379
    %810 = vst [vmem:[#allocation10 + $0x60] sm:$0xff] %v380
    %811 = vst [vmem:[#allocation10 + $0x68] sm:$0xff] %v381
    %812 = vst [vmem:[#allocation10 + $0x70] sm:$0xff] %v382
    %813 = vst [vmem:[#allocation10 + $0x78] sm:$0xff] %v383
    %814 = vxpose.xlu0.b32.start [1/16] %v720, 128
    %815 = vxpose.xlu0.b32.cont [2/16] %v725, 128
    %816 = vxpose.xlu0.b32.cont [3/16] %v730, 128
    %817 = vxpose.xlu0.b32.cont [4/16] %v735, 128
    %818 = vxpose.xlu0.b32.cont [5/16] %v740, 128
    %819 = vxpose.xlu0.b32.cont [6/16] %v745, 128
    %820 = vxpose.xlu0.b32.cont [7/16] %v750, 128
    %821 = vxpose.xlu0.b32.cont [8/16] %v755, 128
    %822 = vxpose.xlu0.b32.cont [9/16] %v760, 128
    %823 = vxpose.xlu0.b32.cont [10/16] %v765, 128
    %824 = vxpose.xlu0.b32.cont [11/16] %v770, 128
    %825 = vxpose.xlu0.b32.cont [12/16] %v775, 128
    %826 = vxpose.xlu0.b32.cont [13/16] %v780, 128
    %827 = vxpose.xlu0.b32.cont [14/16] %v785, 128
    %828 = vxpose.xlu0.b32.cont [15/16] %v790, 128
    %829 = vxpose.xlu0.b32.end [16/16] %v795, 128
    %v830 = vpop.trf.xlu0
    %v831 = vpop.trf.xlu0
    %v832 = vpop.trf.xlu0
    %v833 = vpop.trf.xlu0
    %v834 = vpop.trf.xlu0
    %v835 = vpop.trf.xlu0
    %v836 = vpop.trf.xlu0
    %v837 = vpop.trf.xlu0
    %v838 = vpop.trf.xlu0
    %v839 = vpop.trf.xlu0
    %v840 = vpop.trf.xlu0
    %v841 = vpop.trf.xlu0
    %v842 = vpop.trf.xlu0
    %v843 = vpop.trf.xlu0
    %v844 = vpop.trf.xlu0
    %v845 = vpop.trf.xlu0
    %846 = vst [vmem:[#allocation11] sm:$0xff] %v830
    %847 = vst [vmem:[#allocation11 + $0x8] sm:$0xff] %v831
    %848 = vst [vmem:[#allocation11 + $0x10] sm:$0xff] %v832
    %849 = vst [vmem:[#allocation11 + $0x18] sm:$0xff] %v833
    %850 = vst [vmem:[#allocation11 + $0x20] sm:$0xff] %v834
    %851 = vst [vmem:[#allocation11 + $0x28] sm:$0xff] %v835
    %852 = vst [vmem:[#allocation11 + $0x30] sm:$0xff] %v836
    %853 = vst [vmem:[#allocation11 + $0x38] sm:$0xff] %v837
    %854 = vst [vmem:[#allocation11 + $0x40] sm:$0xff] %v838
    %855 = vst [vmem:[#allocation11 + $0x48] sm:$0xff] %v839
    %856 = vst [vmem:[#allocation11 + $0x50] sm:$0xff] %v840
    %857 = vst [vmem:[#allocation11 + $0x58] sm:$0xff] %v841
    %858 = vst [vmem:[#allocation11 + $0x60] sm:$0xff] %v842
    %859 = vst [vmem:[#allocation11 + $0x68] sm:$0xff] %v843
    %860 = vst [vmem:[#allocation11 + $0x70] sm:$0xff] %v844
    %861 = vst [vmem:[#allocation11 + $0x78] sm:$0xff] %v845
    // Predicated region
    $region50: #{tpu_custom_call.1} parent=1 // pred_check
      _
    $region51: #{tpu_custom_call.1} parent=1 // pred_check_branch
      %863 = sbr.rel (0) target = $region53
    $region52: #{tpu_custom_call.1} parent=1 // pred_region
      %s865 = ssub.s32 2048, 2048
      %866 = vsyncadd [#allocation4], %s865
      %s867 = sshll.u32 [#allocation10], 4
      %s868 = int_to_ptr.vmem [resolvable:$true] %s867
      %873 = dma.vmem_to_hbm [thread:$0]  %s868, 2048, %s8, [#allocation4], 128, 128, 8
    $region53: #{tpu_custom_call.1} parent=1 // pred_fallthru
      _
    // Predicated region
    $region54: #{tpu_custom_call.1} parent=1 // pred_check
      _
    $region55: #{tpu_custom_call.1} parent=1 // pred_check_branch
      %875 = sbr.rel (0) target = $region57
    $region56: #{tpu_custom_call.1} parent=1 // pred_region
      %s877 = ssub.s32 2048, 2048
      %878 = vsyncadd [#allocation12], %s877
      %s879 = sshll.u32 [#allocation11], 4
      %s880 = int_to_ptr.vmem [resolvable:$true] %s879
      %885 = dma.vmem_to_hbm [thread:$0]  %s880, 2048, %s9, [#allocation12], 128, 128, 8
    $region57: #{tpu_custom_call.1} parent=1 // pred_fallthru
      _
    // Predicated region
    $region58: #{tpu_custom_call.1} parent=1 // pred_check
      _
    $region59: #{tpu_custom_call.1} parent=1 // pred_check_branch
      %887 = sbr.rel (0) target = $region61
    $region60: #{tpu_custom_call.1} parent=1 // pred_region
      %888 = dma.done [#allocation4], 2048
    $region61: #{tpu_custom_call.1} parent=1 // pred_fallthru
      _
    // Predicated region
    $region62: #{tpu_custom_call.1} parent=1 // pred_check
      _
    $region63: #{tpu_custom_call.1} parent=1 // pred_check_branch
      %890 = sbr.rel (0) target = $region65
    $region64: #{tpu_custom_call.1} parent=1 // pred_region
      %891 = dma.done [#allocation12], 2048
    $region65: #{tpu_custom_call.1} parent=1 // pred_fallthru
      _
    %892 = vsyncpa [#allocation3], 1
    %893 = vsyncpa [#allocation6], 1
    %894 = vsyncpa [#allocation9], 1
    %895 = vsyncpa [#allocation4], 1
    %896 = vsyncpa [#allocation12], 1

</llo_original>
